<compile_context>
chip_gen: v7x
topology: tpu7x:2x2x1
jax: 0.10.0
libtpu: 0.0.40
codegen_flags: <defaults>
</compile_context>

<pallas_src>
import jax
import jax.numpy as jnp
from jax import lax
from jax.experimental import pallas as pl
from jax.experimental.pallas import tpu as pltpu


def _round_up(v, m):
    return (v + m - 1) // m * m


def _linear_kernel_inplace(x_ref, w_ref, b_ref, o_ref):
    """f32 output: init resident output block with bias, accumulate over K."""
    kk = pl.program_id(2)

    @pl.when(kk == 0)
    def _init():
        o_ref[...] = jnp.broadcast_to(b_ref[...], o_ref.shape)

    # x tile: [tm, tk], weight tile: [tn, tk] (row-major, no transpose in HBM);
    # contract the K axis of both -> [tm, tn] on the MXU.
    o_ref[...] += lax.dot_general(
        x_ref[...],
        w_ref[...],
        dimension_numbers=(((1,), (1,)), ((), ())),
        preferred_element_type=jnp.float32,
    )


def _linear_kernel_scratch(x_ref, w_ref, b_ref, o_ref, acc_ref):
    """Narrow output dtypes: f32 scratch accumulator, cast in the epilogue."""
    kk = pl.program_id(2)

    @pl.when(kk == 0)
    def _init():
        acc_ref[...] = jnp.broadcast_to(b_ref[...], acc_ref.shape).astype(jnp.float32)

    acc_ref[...] += lax.dot_general(
        x_ref[...],
        w_ref[...],
        dimension_numbers=(((1,), (1,)), ((), ())),
        preferred_element_type=jnp.float32,
    )

    @pl.when(kk == pl.num_programs(2) - 1)
    def _finalize():
        o_ref[...] = acc_ref[...].astype(o_ref.dtype)


@jax.jit
def linear_layer_forward(x, weight, bias):
    """LinearLayer forward: flatten(start_dim=1); y = x @ W.T + b.

    x: [N, ...] (flattened to [N, K]); weight: [out_features, K]; bias: [out_features].
    """
    if x.ndim > 2:
        x = x.reshape(x.shape[0], -1)          # torch.flatten(x, start_dim=1)
    n, k = x.shape
    out_f = weight.shape[0]
    out_dtype = x.dtype

    # Sublane packing alignment by dtype width (f32: 8, bf16: 16, int8/fp8: 32).
    row_align = {4: 8, 2: 16, 1: 32}.get(jnp.dtype(out_dtype).itemsize, 8)

    # Tile sizes: capped so double-buffered x/w tiles + output stay within a
    # few MiB of VMEM on every generation (v5e 16 MiB scoped, v7x 64 MiB phys).
    tm = min(256, _round_up(n, row_align))
    tn = min(256, _round_up(out_f, 128))
    tk = min(1024, _round_up(k, 128))

    n_pad = _round_up(n, tm)
    out_pad = _round_up(out_f, tn)
    k_pad = _round_up(k, tk)

    # Zero-pad to tile multiples: zeros along K contribute nothing to the dot;
    # padded rows / output columns are sliced off below.
    x_p = jnp.pad(x, ((0, n_pad - n), (0, k_pad - k)))
    w_p = jnp.pad(weight, ((0, out_pad - out_f), (0, k_pad - k)))
    b_p = jnp.pad(bias, (0, out_pad - out_f)).reshape(1, out_pad)

    grid = (n_pad // tm, out_pad // tn, k_pad // tk)

    in_specs = [
        pl.BlockSpec((tm, tk), lambda i, j, kk: (i, kk)),   # x tile
        pl.BlockSpec((tn, tk), lambda i, j, kk: (j, kk)),   # weight tile [out, K]
        pl.BlockSpec((1, tn), lambda i, j, kk: (0, j)),     # bias tile
    ]
    out_spec = pl.BlockSpec((tm, tn), lambda i, j, kk: (i, j))

    if out_dtype == jnp.float32:
        kernel = _linear_kernel_inplace
        scratch_shapes = []
        b_p = b_p.astype(jnp.float32)
    else:
        kernel = _linear_kernel_scratch
        scratch_shapes = [pltpu.VMEM((tm, tn), jnp.float32)]

    y_p = pl.pallas_call(
        kernel,
        out_shape=jax.ShapeDtypeStruct((n_pad, out_pad), out_dtype),
        grid_spec=pltpu.PrefetchScalarGridSpec(
            num_scalar_prefetch=0,
            grid=grid,
            in_specs=in_specs,
            out_specs=out_spec,
            scratch_shapes=scratch_shapes,
        ),
        compiler_params=pltpu.CompilerParams(
            dimension_semantics=("parallel", "parallel", "arbitrary"),
        ),
    )(x_p, w_p, b_p)

    return y_p[:n, :out_f]


if __name__ == "__main__":
    # Small shapes consistent with the module: NCHW input flattened to features.
    N, C, H, W = 2, 4, 16, 16
    in_features = C * H * W                    # 1024
    out_features = 32

    key = jax.random.PRNGKey(0)
    kx, kw, kb = jax.random.split(key, 3)

    x = jax.random.normal(kx, (N, C, H, W), dtype=jnp.float32)
    # Deterministic synthetic params (nn.Linear shapes: weight [out, in], bias [out]).
    weight = jax.random.normal(kw, (out_features, in_features), dtype=jnp.float32) * 0.02
    bias = jax.random.normal(kb, (out_features,), dtype=jnp.float32) * 0.02

    y = linear_layer_forward(x, weight, bias)
    y = jax.block_until_ready(y)

    # Pure-JAX reference check of the forward semantics.
    y_ref = x.reshape(N, -1) @ weight.T + bias
    assert y.shape == (N, out_features)
    assert jnp.allclose(y, y_ref, atol=1e-4, rtol=1e-4), "mismatch vs reference"

    print("KERNEL_OK")
</pallas_src>

<mosaic_0001>
module attributes {stable_mosaic.version = 11 : i64} {
  func.func @_linear_kernel_inplace(%arg0: i32, %arg1: i32, %arg2: i32, %arg3: memref<8x1024xf32, #tpu.memory_space<vmem>>, %arg4: memref<128x1024xf32, #tpu.memory_space<vmem>>, %arg5: memref<1x128xf32, #tpu.memory_space<vmem>>, %arg6: memref<8x128xf32, #tpu.memory_space<vmem>>) attributes {dimension_semantics = [#tpu.dimension_semantics<parallel>, #tpu.dimension_semantics<parallel>, #tpu.dimension_semantics<arbitrary>], iteration_bounds = array<i64: 1, 1, 1>, scalar_prefetch = 0 : i64, scratch_operands = 0 : i64, tpu.core_type = #tpu.core_type<tc>, window_params = [{transform_indices = @transform_0, window_bounds = array<i64: 8, 1024>}, {transform_indices = @transform_1, window_bounds = array<i64: 128, 1024>}, {transform_indices = @transform_2, window_bounds = array<i64: 1, 128>}, {transform_indices = @transform_3, window_bounds = array<i64: 8, 128>}]} {
    %c0_i32 = arith.constant 0 : i32
    %0 = arith.cmpi eq, %arg2, %c0_i32 : i32
    %1 = arith.extui %0 : i1 to i32
    %c0_i32_0 = arith.constant 0 : i32
    %2 = arith.cmpi ne, %1, %c0_i32_0 : i32
    scf.if %2 {
      %c0_8 = arith.constant 0 : index
      %c0_9 = arith.constant 0 : index
      %9 = vector.load %arg5[%c0_8, %c0_9] : memref<1x128xf32, #tpu.memory_space<vmem>>, vector<1x128xf32>
      %10 = vector.shape_cast %9 : vector<1x128xf32> to vector<1x128xf32>
      %11 = vector.broadcast %10 : vector<1x128xf32> to vector<8x128xf32>
      %c0_10 = arith.constant 0 : index
      %c0_11 = arith.constant 0 : index
      %12 = vector.load %arg6[%c0_10, %c0_11] : memref<8x128xf32, #tpu.memory_space<vmem>>, vector<8x128xf32>
      tpu.vector_store %arg6[%c0_10, %c0_11], %11 {strides = array<i32>} : memref<8x128xf32, #tpu.memory_space<vmem>>, vector<8x128xf32>,
    } else {
    }
    %c0 = arith.constant 0 : index
    %c0_1 = arith.constant 0 : index
    %3 = vector.load %arg6[%c0, %c0_1] : memref<8x128xf32, #tpu.memory_space<vmem>>, vector<8x128xf32>
    %c0_2 = arith.constant 0 : index
    %c0_3 = arith.constant 0 : index
    %4 = vector.load %arg3[%c0_2, %c0_3] : memref<8x1024xf32, #tpu.memory_space<vmem>>, vector<8x1024xf32>
    %c0_4 = arith.constant 0 : index
    %c0_5 = arith.constant 0 : index
    %5 = vector.load %arg4[%c0_4, %c0_5] : memref<128x1024xf32, #tpu.memory_space<vmem>>, vector<128x1024xf32>
    %cst = arith.constant dense<0.000000e+00> : vector<8x128xf32>
    %6 = tpu.matmul %4, %5, %cst {dimension_numbers = #tpu.dot_dimension_numbers<[1], [1], [0], [0], [0, 0, 1, 0], [], []>} : vector<8x1024xf32>, vector<128x1024xf32>, vector<8x128xf32> -> vector<8x128xf32>
    %7 = arith.addf %3, %6 : vector<8x128xf32>
    %c0_6 = arith.constant 0 : index
    %c0_7 = arith.constant 0 : index
    %8 = vector.load %arg6[%c0_6, %c0_7] : memref<8x128xf32, #tpu.memory_space<vmem>>, vector<8x128xf32>
    tpu.vector_store %arg6[%c0_6, %c0_7], %7 {strides = array<i32>} : memref<8x128xf32, #tpu.memory_space<vmem>>, vector<8x128xf32>,
    return
  }
  func.func @transform_0(%arg0: i32, %arg1: i32, %arg2: i32) -> (i32, i32) {
    %c0_i32 = arith.constant 0 : i32
    return %arg0, %arg2 : i32, i32
  }
  func.func @transform_1(%arg0: i32, %arg1: i32, %arg2: i32) -> (i32, i32) {
    %c0_i32 = arith.constant 0 : i32
    return %arg1, %arg2 : i32, i32
  }
  func.func @transform_2(%arg0: i32, %arg1: i32, %arg2: i32) -> (i32, i32) {
    %c0_i32 = arith.constant 0 : i32
    %c0_i32_0 = arith.constant 0 : i32
    return %c0_i32, %arg1 : i32, i32
  }
  func.func @transform_3(%arg0: i32, %arg1: i32, %arg2: i32) -> (i32, i32) {
    %c0_i32 = arith.constant 0 : i32
    return %arg0, %arg1 : i32, i32
  }
}

</mosaic_0001>

<llo_original>
// kernel: linear_layer_forward.1
$region0: #{linear_layer_forward.1}
  #allocation0 [shape = 'u32[]', space=smem, size = 0x4, offset = 0x4, fixed_abs, tag = 'smem constant byte address 0x4 - core index']
  #allocation1 [shape = 'u32[144,128]{1,0:T(1,128)}', space=vmem, size = 0x12000, scoped, tag = 'internal scratch']
  %s0 = inlined_call_operand.vmem [shape: f32[8,1024], index: 0, kind: input, shape index: {}]
  %s1 = inlined_call_operand.vmem [shape: f32[128,1024], index: 1, kind: input, shape index: {}]
  %s2 = inlined_call_operand.vmem [shape: f32[1,128], index: 2, kind: input, shape index: {}]
  %s3 = inlined_call_operand.vmem [shape: f32[8,128], index: 3, kind: output, shape index: {}]
  %s4 = sld [smem:[#allocation0]]
  $region26: #{linear_layer_forward.1} parent=0
    _
  %s6 = ssub.s32 1, %s4
  %s7 = scalar_select 0, %s6, %s4
  // Predicated region
  $region2: #{linear_layer_forward.1} parent=0 // pred_check
    _
  $region3: #{linear_layer_forward.1} parent=0 // pred_check_branch
    %9 = sbr.rel (0) target = $region5
  $region4: #{linear_layer_forward.1} parent=0 // pred_region
    _
  $region5: #{linear_layer_forward.1} parent=0 // pred_fallthru
    _
  // Predicated region
  $region6: #{linear_layer_forward.1} parent=0 // pred_check
    _
  $region7: #{linear_layer_forward.1} parent=0 // pred_check_branch
    %11 = sbr.rel (0) target = $region9
  $region8: #{linear_layer_forward.1} parent=0 // pred_region
    _
  $region9: #{linear_layer_forward.1} parent=0 // pred_fallthru
    _
  // Predicated region
  $region10: #{linear_layer_forward.1} parent=0 // pred_check
    _
  $region11: #{linear_layer_forward.1} parent=0 // pred_check_branch
    %13 = sbr.rel (0) target = $region13
  $region12: #{linear_layer_forward.1} parent=0 // pred_region
    _
  $region13: #{linear_layer_forward.1} parent=0 // pred_fallthru
    _
  %p14 = scmp.eq.s32.totalorder 0, 0
  // Predicated region
  $region14: #{linear_layer_forward.1} parent=0 // pred_check
    %p15 = pneg %p14
  $region15: #{linear_layer_forward.1} parent=0 // pred_check_branch
    %17 = sbr.rel (%p15) target = $region17
  $region16: #{linear_layer_forward.1} parent=0 // pred_region
    %v18 = vld [vmem:[%s2] sm:$0x1]
    %v20 = vlaneseq
    %v21 = vshrl.u32 %v20, 7
    %v22 = vsub.s32 0, %v21
    %v23 = vrot.slane %v18, %v22
    %25 = vst [vmem:[%s3] sm:$0xff] %v23
  $region17: #{linear_layer_forward.1} parent=0 // pred_fallthru
    _
  %v26 = vld [vmem:[%s3] sm:$0xff]
  %v27 = vld [vmem:[%s0] sm:$0xff]
  %v28 = vld [vmem:[%s0 + $0x8] sm:$0xff]
  %v29 = vld [vmem:[%s0 + $0x10] sm:$0xff]
  %v30 = vld [vmem:[%s0 + $0x18] sm:$0xff]
  %v31 = vld [vmem:[%s0 + $0x20] sm:$0xff]
  %v32 = vld [vmem:[%s0 + $0x28] sm:$0xff]
  %v33 = vld [vmem:[%s0 + $0x30] sm:$0xff]
  %v34 = vld [vmem:[%s0 + $0x38] sm:$0xff]
  %v35 = vld [vmem:[%s1] sm:$0xff]
  %v36 = vld [vmem:[%s1 + $0x8] sm:$0xff]
  %v37 = vld [vmem:[%s1 + $0x10] sm:$0xff]
  %v38 = vld [vmem:[%s1 + $0x18] sm:$0xff]
  %v39 = vld [vmem:[%s1 + $0x20] sm:$0xff]
  %v40 = vld [vmem:[%s1 + $0x28] sm:$0xff]
  %v41 = vld [vmem:[%s1 + $0x30] sm:$0xff]
  %v42 = vld [vmem:[%s1 + $0x38] sm:$0xff]
  %v43 = vld [vmem:[%s1 + $0x40] sm:$0xff]
  %v44 = vld [vmem:[%s1 + $0x48] sm:$0xff]
  %v45 = vld [vmem:[%s1 + $0x50] sm:$0xff]
  %v46 = vld [vmem:[%s1 + $0x58] sm:$0xff]
  %v47 = vld [vmem:[%s1 + $0x60] sm:$0xff]
  %v48 = vld [vmem:[%s1 + $0x68] sm:$0xff]
  %v49 = vld [vmem:[%s1 + $0x70] sm:$0xff]
  %v50 = vld [vmem:[%s1 + $0x78] sm:$0xff]
  %v51 = vld [vmem:[%s1 + $0x80] sm:$0xff]
  %v52 = vld [vmem:[%s1 + $0x88] sm:$0xff]
  %v53 = vld [vmem:[%s1 + $0x90] sm:$0xff]
  %v54 = vld [vmem:[%s1 + $0x98] sm:$0xff]
  %v55 = vld [vmem:[%s1 + $0xa0] sm:$0xff]
  %v56 = vld [vmem:[%s1 + $0xa8] sm:$0xff]
  %v57 = vld [vmem:[%s1 + $0xb0] sm:$0xff]
  %v58 = vld [vmem:[%s1 + $0xb8] sm:$0xff]
  %v59 = vld [vmem:[%s1 + $0xc0] sm:$0xff]
  %v60 = vld [vmem:[%s1 + $0xc8] sm:$0xff]
  %v61 = vld [vmem:[%s1 + $0xd0] sm:$0xff]
  %v62 = vld [vmem:[%s1 + $0xd8] sm:$0xff]
  %v63 = vld [vmem:[%s1 + $0xe0] sm:$0xff]
  %v64 = vld [vmem:[%s1 + $0xe8] sm:$0xff]
  %v65 = vld [vmem:[%s1 + $0xf0] sm:$0xff]
  %v66 = vld [vmem:[%s1 + $0xf8] sm:$0xff]
  %v67 = vld [vmem:[%s1 + $0x100] sm:$0xff]
  %v68 = vld [vmem:[%s1 + $0x108] sm:$0xff]
  %v69 = vld [vmem:[%s1 + $0x110] sm:$0xff]
  %v70 = vld [vmem:[%s1 + $0x118] sm:$0xff]
  %v71 = vld [vmem:[%s1 + $0x120] sm:$0xff]
  %v72 = vld [vmem:[%s1 + $0x128] sm:$0xff]
  %v73 = vld [vmem:[%s1 + $0x130] sm:$0xff]
  %v74 = vld [vmem:[%s1 + $0x138] sm:$0xff]
  %v75 = vld [vmem:[%s1 + $0x140] sm:$0xff]
  %v76 = vld [vmem:[%s1 + $0x148] sm:$0xff]
  %v77 = vld [vmem:[%s1 + $0x150] sm:$0xff]
  %v78 = vld [vmem:[%s1 + $0x158] sm:$0xff]
  %v79 = vld [vmem:[%s1 + $0x160] sm:$0xff]
  %v80 = vld [vmem:[%s1 + $0x168] sm:$0xff]
  %v81 = vld [vmem:[%s1 + $0x170] sm:$0xff]
  %v82 = vld [vmem:[%s1 + $0x178] sm:$0xff]
  %v83 = vld [vmem:[%s1 + $0x180] sm:$0xff]
  %v84 = vld [vmem:[%s1 + $0x188] sm:$0xff]
  %v85 = vld [vmem:[%s1 + $0x190] sm:$0xff]
  %v86 = vld [vmem:[%s1 + $0x198] sm:$0xff]
  %v87 = vld [vmem:[%s1 + $0x1a0] sm:$0xff]
  %v88 = vld [vmem:[%s1 + $0x1a8] sm:$0xff]
  %v89 = vld [vmem:[%s1 + $0x1b0] sm:$0xff]
  %v90 = vld [vmem:[%s1 + $0x1b8] sm:$0xff]
  %v91 = vld [vmem:[%s1 + $0x1c0] sm:$0xff]
  %v92 = vld [vmem:[%s1 + $0x1c8] sm:$0xff]
  %v93 = vld [vmem:[%s1 + $0x1d0] sm:$0xff]
  %v94 = vld [vmem:[%s1 + $0x1d8] sm:$0xff]
  %v95 = vld [vmem:[%s1 + $0x1e0] sm:$0xff]
  %v96 = vld [vmem:[%s1 + $0x1e8] sm:$0xff]
  %v97 = vld [vmem:[%s1 + $0x1f0] sm:$0xff]
  %v98 = vld [vmem:[%s1 + $0x1f8] sm:$0xff]
  %v99 = vld [vmem:[%s1 + $0x200] sm:$0xff]
  %v100 = vld [vmem:[%s1 + $0x208] sm:$0xff]
  %v101 = vld [vmem:[%s1 + $0x210] sm:$0xff]
  %v102 = vld [vmem:[%s1 + $0x218] sm:$0xff]
  %v103 = vld [vmem:[%s1 + $0x220] sm:$0xff]
  %v104 = vld [vmem:[%s1 + $0x228] sm:$0xff]
  %v105 = vld [vmem:[%s1 + $0x230] sm:$0xff]
  %v106 = vld [vmem:[%s1 + $0x238] sm:$0xff]
  %v107 = vld [vmem:[%s1 + $0x240] sm:$0xff]
  %v108 = vld [vmem:[%s1 + $0x248] sm:$0xff]
  %v109 = vld [vmem:[%s1 + $0x250] sm:$0xff]
  %v110 = vld [vmem:[%s1 + $0x258] sm:$0xff]
  %v111 = vld [vmem:[%s1 + $0x260] sm:$0xff]
  %v112 = vld [vmem:[%s1 + $0x268] sm:$0xff]
  %v113 = vld [vmem:[%s1 + $0x270] sm:$0xff]
  %v114 = vld [vmem:[%s1 + $0x278] sm:$0xff]
  %v115 = vld [vmem:[%s1 + $0x280] sm:$0xff]
  %v116 = vld [vmem:[%s1 + $0x288] sm:$0xff]
  %v117 = vld [vmem:[%s1 + $0x290] sm:$0xff]
  %v118 = vld [vmem:[%s1 + $0x298] sm:$0xff]
  %v119 = vld [vmem:[%s1 + $0x2a0] sm:$0xff]
  %v120 = vld [vmem:[%s1 + $0x2a8] sm:$0xff]
  %v121 = vld [vmem:[%s1 + $0x2b0] sm:$0xff]
  %v122 = vld [vmem:[%s1 + $0x2b8] sm:$0xff]
  %v123 = vld [vmem:[%s1 + $0x2c0] sm:$0xff]
  %v124 = vld [vmem:[%s1 + $0x2c8] sm:$0xff]
  %v125 = vld [vmem:[%s1 + $0x2d0] sm:$0xff]
  %v126 = vld [vmem:[%s1 + $0x2d8] sm:$0xff]
  %v127 = vld [vmem:[%s1 + $0x2e0] sm:$0xff]
  %v128 = vld [vmem:[%s1 + $0x2e8] sm:$0xff]
  %v129 = vld [vmem:[%s1 + $0x2f0] sm:$0xff]
  %v130 = vld [vmem:[%s1 + $0x2f8] sm:$0xff]
  %v131 = vld [vmem:[%s1 + $0x300] sm:$0xff]
  %v132 = vld [vmem:[%s1 + $0x308] sm:$0xff]
  %v133 = vld [vmem:[%s1 + $0x310] sm:$0xff]
  %v134 = vld [vmem:[%s1 + $0x318] sm:$0xff]
  %v135 = vld [vmem:[%s1 + $0x320] sm:$0xff]
  %v136 = vld [vmem:[%s1 + $0x328] sm:$0xff]
  %v137 = vld [vmem:[%s1 + $0x330] sm:$0xff]
  %v138 = vld [vmem:[%s1 + $0x338] sm:$0xff]
  %v139 = vld [vmem:[%s1 + $0x340] sm:$0xff]
  %v140 = vld [vmem:[%s1 + $0x348] sm:$0xff]
  %v141 = vld [vmem:[%s1 + $0x350] sm:$0xff]
  %v142 = vld [vmem:[%s1 + $0x358] sm:$0xff]
  %v143 = vld [vmem:[%s1 + $0x360] sm:$0xff]
  %v144 = vld [vmem:[%s1 + $0x368] sm:$0xff]
  %v145 = vld [vmem:[%s1 + $0x370] sm:$0xff]
  %v146 = vld [vmem:[%s1 + $0x378] sm:$0xff]
  %v147 = vld [vmem:[%s1 + $0x380] sm:$0xff]
  %v148 = vld [vmem:[%s1 + $0x388] sm:$0xff]
  %v149 = vld [vmem:[%s1 + $0x390] sm:$0xff]
  %v150 = vld [vmem:[%s1 + $0x398] sm:$0xff]
  %v151 = vld [vmem:[%s1 + $0x3a0] sm:$0xff]
  %v152 = vld [vmem:[%s1 + $0x3a8] sm:$0xff]
  %v153 = vld [vmem:[%s1 + $0x3b0] sm:$0xff]
  %v154 = vld [vmem:[%s1 + $0x3b8] sm:$0xff]
  %v155 = vld [vmem:[%s1 + $0x3c0] sm:$0xff]
  %v156 = vld [vmem:[%s1 + $0x3c8] sm:$0xff]
  %v157 = vld [vmem:[%s1 + $0x3d0] sm:$0xff]
  %v158 = vld [vmem:[%s1 + $0x3d8] sm:$0xff]
  %v159 = vld [vmem:[%s1 + $0x3e0] sm:$0xff]
  %v160 = vld [vmem:[%s1 + $0x3e8] sm:$0xff]
  %v161 = vld [vmem:[%s1 + $0x3f0] sm:$0xff]
  %v162 = vld [vmem:[%s1 + $0x3f8] sm:$0xff]
  %163 = vmatprep.subr.mxu0 %v36
  %164 = vmatpush1.xpose.msra.mxu0 %v35
  %165 = vmatprep.subr.mxu0 %v44
  %166 = vmatpush1.xpose.msra.mxu0 %v43
  %167 = vmatprep.subr.mxu0 %v52
  %168 = vmatpush1.xpose.msra.mxu0 %v51
  %169 = vmatprep.subr.mxu0 %v60
  %170 = vmatpush1.xpose.msra.mxu0 %v59
  %171 = vmatprep.subr.mxu0 %v68
  %172 = vmatpush1.xpose.msra.mxu0 %v67
  %173 = vmatprep.subr.mxu0 %v76
  %174 = vmatpush1.xpose.msra.mxu0 %v75
  %175 = vmatprep.subr.mxu0 %v84
  %176 = vmatpush1.xpose.msra.mxu0 %v83
  %177 = vmatprep.subr.mxu0 %v92
  %178 = vmatpush1.xpose.msra.mxu0 %v91
  %179 = vmatprep.subr.mxu0 %v100
  %180 = vmatpush1.xpose.msra.mxu0 %v99
  %181 = vmatprep.subr.mxu0 %v108
  %182 = vmatpush1.xpose.msra.mxu0 %v107
  %183 = vmatprep.subr.mxu0 %v116
  %184 = vmatpush1.xpose.msra.mxu0 %v115
  %185 = vmatprep.subr.mxu0 %v124
  %186 = vmatpush1.xpose.msra.mxu0 %v123
  %187 = vmatprep.subr.mxu0 %v132
  %188 = vmatpush1.xpose.msra.mxu0 %v131
  %189 = vmatprep.subr.mxu0 %v140
  %190 = vmatpush1.xpose.msra.mxu0 %v139
  %191 = vmatprep.subr.mxu0 %v148
  %192 = vmatpush1.xpose.msra.mxu0 %v147
  %193 = vmatprep.subr.mxu0 %v156
  %194 = vmatpush1.xpose.msra.mxu0 %v155
  %195 = vmatprep.subr.mxu0 0.0
  %196 = vmatpush1.xpose.msra.mxu0 0.0
  %197 = vmatprep.subr.mxu0 0.0
  %198 = vmatpush1.xpose.msra.mxu0 0.0
  %199 = vmatprep.subr.mxu0 0.0
  %200 = vmatpush1.xpose.msra.mxu0 0.0
  %201 = vmatprep.subr.mxu0 0.0
  %202 = vmatpush1.xpose.msra.mxu0 0.0
  %203 = vmatprep.subr.mxu0 0.0
  %204 = vmatpush1.xpose.msra.mxu0 0.0
  %205 = vmatprep.subr.mxu0 0.0
  %206 = vmatpush1.xpose.msra.mxu0 0.0
  %207 = vmatprep.subr.mxu0 0.0
  %208 = vmatpush1.xpose.msra.mxu0 0.0
  %209 = vmatprep.subr.mxu0 0.0
  %210 = vmatpush1.xpose.msra.mxu0 0.0
  %211 = vmatprep.subr.mxu0 0.0
  %212 = vmatpush1.xpose.msra.mxu0 0.0
  %213 = vmatprep.subr.mxu0 0.0
  %214 = vmatpush1.xpose.msra.mxu0 0.0
  %215 = vmatprep.subr.mxu0 0.0
  %216 = vmatpush1.xpose.msra.mxu0 0.0
  %217 = vmatprep.subr.mxu0 0.0
  %218 = vmatpush1.xpose.msra.mxu0 0.0
  %219 = vmatprep.subr.mxu0 0.0
  %220 = vmatpush1.xpose.msra.mxu0 0.0
  %221 = vmatprep.subr.mxu0 0.0
  %222 = vmatpush1.xpose.msra.mxu0 0.0
  %223 = vmatprep.subr.mxu0 0.0
  %224 = vmatpush1.xpose.msra.mxu0 0.0
  %225 = vmatprep.subr.mxu0 0.0
  %226 = vmatpush1.xpose.msra.mxu0 0.0
  %227 = vmatprep.mubr.f32.mxu0 %v28
  %228 = vmatmul.mubr.f32.gmra.mrb[0].mxu0 %v27
  %v229 = vpop.f32.mrb[0].mxu0
  %v230 = vadd.f32 0.0, %v229
  %v231 = vpop.f32.mrb[0].mxu0
  %232 = vdwg.mxu0
  %233 = vmatprep.subr.mxu0 %v38
  %234 = vmatpush1.xpose.msra.mxu0 %v37
  %235 = vmatprep.subr.mxu0 %v46
  %236 = vmatpush1.xpose.msra.mxu0 %v45
  %237 = vmatprep.subr.mxu0 %v54
  %238 = vmatpush1.xpose.msra.mxu0 %v53
  %239 = vmatprep.subr.mxu0 %v62
  %240 = vmatpush1.xpose.msra.mxu0 %v61
  %241 = vmatprep.subr.mxu0 %v70
  %242 = vmatpush1.xpose.msra.mxu0 %v69
  %243 = vmatprep.subr.mxu0 %v78
  %244 = vmatpush1.xpose.msra.mxu0 %v77
  %245 = vmatprep.subr.mxu0 %v86
  %246 = vmatpush1.xpose.msra.mxu0 %v85
  %247 = vmatprep.subr.mxu0 %v94
  %248 = vmatpush1.xpose.msra.mxu0 %v93
  %249 = vmatprep.subr.mxu0 %v102
  %250 = vmatpush1.xpose.msra.mxu0 %v101
  %251 = vmatprep.subr.mxu0 %v110
  %252 = vmatpush1.xpose.msra.mxu0 %v109
  %253 = vmatprep.subr.mxu0 %v118
  %254 = vmatpush1.xpose.msra.mxu0 %v117
  %255 = vmatprep.subr.mxu0 %v126
  %256 = vmatpush1.xpose.msra.mxu0 %v125
  %257 = vmatprep.subr.mxu0 %v134
  %258 = vmatpush1.xpose.msra.mxu0 %v133
  %259 = vmatprep.subr.mxu0 %v142
  %260 = vmatpush1.xpose.msra.mxu0 %v141
  %261 = vmatprep.subr.mxu0 %v150
  %262 = vmatpush1.xpose.msra.mxu0 %v149
  %263 = vmatprep.subr.mxu0 %v158
  %264 = vmatpush1.xpose.msra.mxu0 %v157
  %265 = vmatprep.subr.mxu0 0.0
  %266 = vmatpush1.xpose.msra.mxu0 0.0
  %267 = vmatprep.subr.mxu0 0.0
  %268 = vmatpush1.xpose.msra.mxu0 0.0
  %269 = vmatprep.subr.mxu0 0.0
  %270 = vmatpush1.xpose.msra.mxu0 0.0
  %271 = vmatprep.subr.mxu0 0.0
  %272 = vmatpush1.xpose.msra.mxu0 0.0
  %273 = vmatprep.subr.mxu0 0.0
  %274 = vmatpush1.xpose.msra.mxu0 0.0
  %275 = vmatprep.subr.mxu0 0.0
  %276 = vmatpush1.xpose.msra.mxu0 0.0
  %277 = vmatprep.subr.mxu0 0.0
  %278 = vmatpush1.xpose.msra.mxu0 0.0
  %279 = vmatprep.subr.mxu0 0.0
  %280 = vmatpush1.xpose.msra.mxu0 0.0
  %281 = vmatprep.subr.mxu0 0.0
  %282 = vmatpush1.xpose.msra.mxu0 0.0
  %283 = vmatprep.subr.mxu0 0.0
  %284 = vmatpush1.xpose.msra.mxu0 0.0
  %285 = vmatprep.subr.mxu0 0.0
  %286 = vmatpush1.xpose.msra.mxu0 0.0
  %287 = vmatprep.subr.mxu0 0.0
  %288 = vmatpush1.xpose.msra.mxu0 0.0
  %289 = vmatprep.subr.mxu0 0.0
  %290 = vmatpush1.xpose.msra.mxu0 0.0
  %291 = vmatprep.subr.mxu0 0.0
  %292 = vmatpush1.xpose.msra.mxu0 0.0
  %293 = vmatprep.subr.mxu0 0.0
  %294 = vmatpush1.xpose.msra.mxu0 0.0
  %295 = vmatprep.subr.mxu0 0.0
  %296 = vmatpush1.xpose.msra.mxu0 0.0
  %297 = vmatprep.mubr.f32.mxu0 %v30
  %298 = vmatmul.mubr.f32.gmra.mrb[0].mxu0 %v29
  %v299 = vpop.f32.mrb[0].mxu0
  %v300 = vadd.f32 %v230, %v299
  %v301 = vpop.f32.mrb[0].mxu0
  %302 = vdwg.mxu0
  %303 = vmatprep.subr.mxu0 %v40
  %304 = vmatpush1.xpose.msra.mxu0 %v39
  %305 = vmatprep.subr.mxu0 %v48
  %306 = vmatpush1.xpose.msra.mxu0 %v47
  %307 = vmatprep.subr.mxu0 %v56
  %308 = vmatpush1.xpose.msra.mxu0 %v55
  %309 = vmatprep.subr.mxu0 %v64
  %310 = vmatpush1.xpose.msra.mxu0 %v63
  %311 = vmatprep.subr.mxu0 %v72
  %312 = vmatpush1.xpose.msra.mxu0 %v71
  %313 = vmatprep.subr.mxu0 %v80
  %314 = vmatpush1.xpose.msra.mxu0 %v79
  %315 = vmatprep.subr.mxu0 %v88
  %316 = vmatpush1.xpose.msra.mxu0 %v87
  %317 = vmatprep.subr.mxu0 %v96
  %318 = vmatpush1.xpose.msra.mxu0 %v95
  %319 = vmatprep.subr.mxu0 %v104
  %320 = vmatpush1.xpose.msra.mxu0 %v103
  %321 = vmatprep.subr.mxu0 %v112
  %322 = vmatpush1.xpose.msra.mxu0 %v111
  %323 = vmatprep.subr.mxu0 %v120
  %324 = vmatpush1.xpose.msra.mxu0 %v119
  %325 = vmatprep.subr.mxu0 %v128
  %326 = vmatpush1.xpose.msra.mxu0 %v127
  %327 = vmatprep.subr.mxu0 %v136
  %328 = vmatpush1.xpose.msra.mxu0 %v135
  %329 = vmatprep.subr.mxu0 %v144
  %330 = vmatpush1.xpose.msra.mxu0 %v143
  %331 = vmatprep.subr.mxu0 %v152
  %332 = vmatpush1.xpose.msra.mxu0 %v151
  %333 = vmatprep.subr.mxu0 %v160
  %334 = vmatpush1.xpose.msra.mxu0 %v159
  %335 = vmatprep.subr.mxu0 0.0
  %336 = vmatpush1.xpose.msra.mxu0 0.0
  %337 = vmatprep.subr.mxu0 0.0
  %338 = vmatpush1.xpose.msra.mxu0 0.0
  %339 = vmatprep.subr.mxu0 0.0
  %340 = vmatpush1.xpose.msra.mxu0 0.0
  %341 = vmatprep.subr.mxu0 0.0
  %342 = vmatpush1.xpose.msra.mxu0 0.0
  %343 = vmatprep.subr.mxu0 0.0
  %344 = vmatpush1.xpose.msra.mxu0 0.0
  %345 = vmatprep.subr.mxu0 0.0
  %346 = vmatpush1.xpose.msra.mxu0 0.0
  %347 = vmatprep.subr.mxu0 0.0
  %348 = vmatpush1.xpose.msra.mxu0 0.0
  %349 = vmatprep.subr.mxu0 0.0
  %350 = vmatpush1.xpose.msra.mxu0 0.0
  %351 = vmatprep.subr.mxu0 0.0
  %352 = vmatpush1.xpose.msra.mxu0 0.0
  %353 = vmatprep.subr.mxu0 0.0
  %354 = vmatpush1.xpose.msra.mxu0 0.0
  %355 = vmatprep.subr.mxu0 0.0
  %356 = vmatpush1.xpose.msra.mxu0 0.0
  %357 = vmatprep.subr.mxu0 0.0
  %358 = vmatpush1.xpose.msra.mxu0 0.0
  %359 = vmatprep.subr.mxu0 0.0
  %360 = vmatpush1.xpose.msra.mxu0 0.0
  %361 = vmatprep.subr.mxu0 0.0
  %362 = vmatpush1.xpose.msra.mxu0 0.0
  %363 = vmatprep.subr.mxu0 0.0
  %364 = vmatpush1.xpose.msra.mxu0 0.0
  %365 = vmatprep.subr.mxu0 0.0
  %366 = vmatpush1.xpose.msra.mxu0 0.0
  %367 = vmatprep.mubr.f32.mxu0 %v32
  %368 = vmatmul.mubr.f32.gmra.mrb[0].mxu0 %v31
  %v369 = vpop.f32.mrb[0].mxu0
  %v370 = vadd.f32 %v300, %v369
  %v371 = vpop.f32.mrb[0].mxu0
  %372 = vdwg.mxu0
  %373 = vmatprep.subr.mxu0 %v42
  %374 = vmatpush1.xpose.msra.mxu0 %v41
  %375 = vmatprep.subr.mxu0 %v50
  %376 = vmatpush1.xpose.msra.mxu0 %v49
  %377 = vmatprep.subr.mxu0 %v58
  %378 = vmatpush1.xpose.msra.mxu0 %v57
  %379 = vmatprep.subr.mxu0 %v66
  %380 = vmatpush1.xpose.msra.mxu0 %v65
  %381 = vmatprep.subr.mxu0 %v74
  %382 = vmatpush1.xpose.msra.mxu0 %v73
  %383 = vmatprep.subr.mxu0 %v82
  %384 = vmatpush1.xpose.msra.mxu0 %v81
  %385 = vmatprep.subr.mxu0 %v90
  %386 = vmatpush1.xpose.msra.mxu0 %v89
  %387 = vmatprep.subr.mxu0 %v98
  %388 = vmatpush1.xpose.msra.mxu0 %v97
  %389 = vmatprep.subr.mxu0 %v106
  %390 = vmatpush1.xpose.msra.mxu0 %v105
  %391 = vmatprep.subr.mxu0 %v114
  %392 = vmatpush1.xpose.msra.mxu0 %v113
  %393 = vmatprep.subr.mxu0 %v122
  %394 = vmatpush1.xpose.msra.mxu0 %v121
  %395 = vmatprep.subr.mxu0 %v130
  %396 = vmatpush1.xpose.msra.mxu0 %v129
  %397 = vmatprep.subr.mxu0 %v138
  %398 = vmatpush1.xpose.msra.mxu0 %v137
  %399 = vmatprep.subr.mxu0 %v146
  %400 = vmatpush1.xpose.msra.mxu0 %v145
  %401 = vmatprep.subr.mxu0 %v154
  %402 = vmatpush1.xpose.msra.mxu0 %v153
  %403 = vmatprep.subr.mxu0 %v162
  %404 = vmatpush1.xpose.msra.mxu0 %v161
  %405 = vmatprep.subr.mxu0 0.0
  %406 = vmatpush1.xpose.msra.mxu0 0.0
  %407 = vmatprep.subr.mxu0 0.0
  %408 = vmatpush1.xpose.msra.mxu0 0.0
  %409 = vmatprep.subr.mxu0 0.0
  %410 = vmatpush1.xpose.msra.mxu0 0.0
  %411 = vmatprep.subr.mxu0 0.0
  %412 = vmatpush1.xpose.msra.mxu0 0.0
  %413 = vmatprep.subr.mxu0 0.0
  %414 = vmatpush1.xpose.msra.mxu0 0.0
  %415 = vmatprep.subr.mxu0 0.0
  %416 = vmatpush1.xpose.msra.mxu0 0.0
  %417 = vmatprep.subr.mxu0 0.0
  %418 = vmatpush1.xpose.msra.mxu0 0.0
  %419 = vmatprep.subr.mxu0 0.0
  %420 = vmatpush1.xpose.msra.mxu0 0.0
  %421 = vmatprep.subr.mxu0 0.0
  %422 = vmatpush1.xpose.msra.mxu0 0.0
  %423 = vmatprep.subr.mxu0 0.0
  %424 = vmatpush1.xpose.msra.mxu0 0.0
  %425 = vmatprep.subr.mxu0 0.0
  %426 = vmatpush1.xpose.msra.mxu0 0.0
  %427 = vmatprep.subr.mxu0 0.0
  %428 = vmatpush1.xpose.msra.mxu0 0.0
  %429 = vmatprep.subr.mxu0 0.0
  %430 = vmatpush1.xpose.msra.mxu0 0.0
  %431 = vmatprep.subr.mxu0 0.0
  %432 = vmatpush1.xpose.msra.mxu0 0.0
  %433 = vmatprep.subr.mxu0 0.0
  %434 = vmatpush1.xpose.msra.mxu0 0.0
  %435 = vmatprep.subr.mxu0 0.0
  %436 = vmatpush1.xpose.msra.mxu0 0.0
  %437 = vmatprep.mubr.f32.mxu0 %v34
  %438 = vmatmul.mubr.f32.gmra.mrb[0].mxu0 %v33
  %v439 = vpop.f32.mrb[0].mxu0
  %v440 = vadd.f32 %v370, %v439
  %v441 = vpop.f32.mrb[0].mxu0
  %442 = vdwg.mxu0
  %v443 = vadd.f32 %v26, %v440
  %444 = vst [vmem:[%s3] sm:$0xff] %v443
  // Predicated region
  $region18: #{linear_layer_forward.1} parent=0 // pred_check
    _
  $region19: #{linear_layer_forward.1} parent=0 // pred_check_branch
    %446 = sbr.rel (0) target = $region21
  $region20: #{linear_layer_forward.1} parent=0 // pred_region
    _
  $region21: #{linear_layer_forward.1} parent=0 // pred_fallthru
    _
  // Predicated region
  $region22: #{linear_layer_forward.1} parent=0 // pred_check
    _
  $region23: #{linear_layer_forward.1} parent=0 // pred_check_branch
    %448 = sbr.rel (0) target = $region25
  $region24: #{linear_layer_forward.1} parent=0 // pred_region
    _
  $region25: #{linear_layer_forward.1} parent=0 // pred_fallthru
    _

</llo_original>
